<compile_context>
chip_gen: v6e
topology: v6e:2x2x1
jax: 0.10.0
libtpu: 0.0.40
codegen_flags: <defaults>
</compile_context>

<pallas_src>
import functools

import jax
import jax.numpy as jnp
import numpy as np
from jax.experimental import pallas as pl
from jax.experimental.pallas import tpu as pltpu


def _round_up(x: int, m: int) -> int:
    return ((x + m - 1) // m) * m


# ---------------------------------------------------------------------------
# Tiled matmul kernels:  O = A @ B^T (+ bias),  A:(M,K), B:(N,K) torch layout
# ---------------------------------------------------------------------------
def _mm_step(a_ref, b_ref, acc_ref):
    # Native-dtype operands, f32 accumulation on the MXU.
    acc_ref[...] += jax.lax.dot_general(
        a_ref[...], b_ref[...],
        dimension_numbers=(((1,), (1,)), ((), ())),
        preferred_element_type=jnp.float32,
    )


def _matmul_kernel(a_ref, b_ref, o_ref, acc_ref):
    @pl.when(pl.program_id(2) == 0)
    def _():
        acc_ref[...] = jnp.zeros_like(acc_ref)

    _mm_step(a_ref, b_ref, acc_ref)

    @pl.when(pl.program_id(2) == pl.num_programs(2) - 1)
    def _():
        o_ref[...] = acc_ref[...].astype(o_ref.dtype)


def _matmul_bias_kernel(a_ref, b_ref, bias_ref, o_ref, acc_ref):
    @pl.when(pl.program_id(2) == 0)
    def _():
        acc_ref[...] = jnp.zeros_like(acc_ref)

    _mm_step(a_ref, b_ref, acc_ref)

    @pl.when(pl.program_id(2) == pl.num_programs(2) - 1)
    def _():
        o_ref[...] = (acc_ref[...] + bias_ref[...].astype(jnp.float32)).astype(o_ref.dtype)


def _linear(x2d, w_nk, bias=None, *, tm_cap=256, tn_cap=512, tk_cap=512):
    """y = x2d @ w_nk.T (+ bias).  x2d: (M, K); w_nk: (N, K) torch Linear layout."""
    m, k = x2d.shape
    n, k2 = w_nk.shape
    assert k2 == k

    def tile(dim, cap):
        # Full-extent block when it fits (no padding); otherwise aligned cap + pad.
        return (dim, dim) if dim <= cap else (cap, _round_up(dim, cap))

    tm, m_pad = tile(m, tm_cap)
    tn, n_pad = tile(n, tn_cap)
    tk, k_pad = tile(k, tk_cap)

    a = x2d if (m_pad, k_pad) == (m, k) else jnp.pad(x2d, ((0, m_pad - m), (0, k_pad - k)))
    b = w_nk if (n_pad, k_pad) == (n, k) else jnp.pad(w_nk, ((0, n_pad - n), (0, k_pad - k)))

    in_specs = [
        pl.BlockSpec((tm, tk), lambda i, j, kk: (i, kk)),
        pl.BlockSpec((tn, tk), lambda i, j, kk: (j, kk)),
    ]
    operands = [a, b]
    if bias is None:
        kernel = _matmul_kernel
    else:
        bias2d = bias.reshape(1, n)
        if n_pad != n:
            bias2d = jnp.pad(bias2d, ((0, 0), (0, n_pad - n)))
        in_specs.append(pl.BlockSpec((1, tn), lambda i, j, kk: (0, j)))
        operands.append(bias2d)
        kernel = _matmul_bias_kernel

    out = pl.pallas_call(
        kernel,
        out_shape=jax.ShapeDtypeStruct((m_pad, n_pad), x2d.dtype),
        grid_spec=pltpu.PrefetchScalarGridSpec(
            num_scalar_prefetch=0,
            grid=(m_pad // tm, n_pad // tn, k_pad // tk),
            in_specs=in_specs,
            out_specs=pl.BlockSpec((tm, tn), lambda i, j, kk: (i, j)),
            scratch_shapes=[pltpu.VMEM((tm, tn), jnp.float32)],
        ),
        compiler_params=pltpu.CompilerParams(
            dimension_semantics=("parallel", "parallel", "arbitrary")
        ),
    )(*operands)

    if (m_pad, n_pad) != (m, n):
        out = out[:m, :n]
    return out


# ---------------------------------------------------------------------------
# Fused per-batch attention: softmax(q k^T * scale) v for every head, reading
# the head-major [Q|K|V] slab and writing (n, heads*dim_head) directly.
# ---------------------------------------------------------------------------
def _attn_kernel(qkv_ref, o_ref, *, heads, dim_head, scale):
    inner = heads * dim_head
    for h in range(heads):                    # static unroll; heads is small
        lo = h * dim_head
        hi = lo + dim_head
        q = qkv_ref[:, lo:hi]                              # (n, d)
        k = qkv_ref[:, inner + lo:inner + hi]              # (n, d)
        v = qkv_ref[:, 2 * inner + lo:2 * inner + hi]      # (n, d)

        # s[i, j] = <q_i, k_j> * scale  (contract head dim of both, no transpose)
        s = jax.lax.dot_general(
            q, k, (((1,), (1,)), ((), ())), preferred_element_type=jnp.float32
        ) * scale

        mx = jnp.max(s, axis=-1, keepdims=True)
        e = jnp.exp(s - mx)
        inv = pl.reciprocal(jnp.sum(e, axis=-1, keepdims=True), approx=True)
        p = (e * inv).astype(v.dtype)

        o = jnp.dot(p, v, preferred_element_type=jnp.float32)  # (n, d)
        o_ref[:, lo:hi] = o.astype(o_ref.dtype)


def _attention(qkv3, *, heads, dim_head, scale):
    b, n, three_inner = qkv3.shape
    inner = heads * dim_head
    assert three_inner == 3 * inner
    kernel = functools.partial(_attn_kernel, heads=heads, dim_head=dim_head, scale=scale)
    return pl.pallas_call(
        kernel,
        out_shape=jax.ShapeDtypeStruct((b, n, inner), qkv3.dtype),
        grid_spec=pltpu.PrefetchScalarGridSpec(
            num_scalar_prefetch=0,
            grid=(b,),
            in_specs=[pl.BlockSpec((None, n, three_inner), lambda bi: (bi, 0, 0))],
            out_specs=pl.BlockSpec((None, n, inner), lambda bi: (bi, 0, 0)),
        ),
        compiler_params=pltpu.CompilerParams(dimension_semantics=("parallel",)),
    )(qkv3)


# ---------------------------------------------------------------------------
# Full forward pass
# ---------------------------------------------------------------------------
def _qkv_head_major_perm(heads, dim_head):
    """Row permutation: torch per-head [q|k|v] layout -> [Q|K|V], head-major."""
    inner = heads * dim_head
    perm = np.empty(3 * inner, dtype=np.int32)
    for part in range(3):                     # 0:q 1:k 2:v
        for h in range(heads):
            src = h * 3 * dim_head + part * dim_head
            dst = part * inner + h * dim_head
            perm[dst:dst + dim_head] = np.arange(src, src + dim_head)
    return perm


def simple_attention(x, w_qkv, w_out, b_out, *, heads, dim_head):
    """x: (b, n, dim).  w_qkv: (3*heads*dim_head, dim).  w_out: (dim, heads*dim_head)."""
    b, n, dim = x.shape
    inner = heads * dim_head
    project_out = not (heads == 1 and dim_head == dim)
    scale = float(dim_head) ** -0.5

    # One-time weight prep (would live at load time in a real module): reorder
    # output rows so the projection emits [Q | K | V], each head-major.
    w_qkv_hm = w_qkv[_qkv_head_major_perm(heads, dim_head)]

    x2d = x.reshape(b * n, dim)
    qkv = _linear(x2d, w_qkv_hm)                       # (b*n, 3*inner), no bias
    qkv3 = qkv.reshape(b, n, 3 * inner)                # metadata-only reshape

    o3 = _attention(qkv3, heads=heads, dim_head=dim_head, scale=scale)  # (b, n, inner)

    if project_out:
        y2d = _linear(o3.reshape(b * n, inner), w_out, b_out)
        return y2d.reshape(b, n, -1)
    return o3


if __name__ == "__main__":
    key = jax.random.PRNGKey(0)
    B, N, DIM = 2, 8, 32
    HEADS, DIM_HEAD = 4, 16
    INNER = HEADS * DIM_HEAD

    k0, k1, k2, k3 = jax.random.split(key, 4)
    x = jax.random.normal(k0, (B, N, DIM), dtype=jnp.float32)
    # PyTorch Linear weight layout: (out_features, in_features).
    w_qkv = jax.random.normal(k1, (3 * INNER, DIM), dtype=jnp.float32) * 0.05
    w_out = jax.random.normal(k2, (DIM, INNER), dtype=jnp.float32) * 0.05
    b_out = jax.random.normal(k3, (DIM,), dtype=jnp.float32) * 0.05

    out = simple_attention(x, w_qkv, w_out, b_out, heads=HEADS, dim_head=DIM_HEAD)
    jax.block_until_ready(out)

    # Pure-JAX reference replicating the PyTorch forward (un-permuted weights),
    # also validating the head-major weight permutation.
    hp = jax.lax.Precision.HIGHEST
    scale = float(DIM_HEAD) ** -0.5
    qkv_r = jnp.einsum("bnd,od->bno", x, w_qkv, precision=hp)
    qkv_r = qkv_r.reshape(B, N, HEADS, -1).transpose(0, 2, 1, 3)
    q_r, k_r, v_r = jnp.split(qkv_r, 3, axis=-1)
    attn = jnp.einsum("bhqd,bhkd->bhqk", q_r, k_r, precision=hp) * scale
    attn = jax.nn.softmax(attn, axis=-1)
    o_r = jnp.einsum("bhqk,bhkd->bhqd", attn, v_r, precision=hp)
    o_r = o_r.transpose(0, 2, 1, 3).reshape(B, N, -1)
    ref = jnp.einsum("bni,oi->bno", o_r, w_out, precision=hp) + b_out

    # Tolerance loosened slightly for the approx (EUP) reciprocal in the softmax.
    assert jnp.allclose(out, ref, atol=1e-2, rtol=1e-2), "mismatch vs reference"

    print("KERNEL_OK")
</pallas_src>

<mosaic_0001>
module attributes {stable_mosaic.version = 11 : i64} {
  func.func @_matmul_kernel(%arg0: i32, %arg1: i32, %arg2: i32, %arg3: memref<16x32xf32, #tpu.memory_space<vmem>>, %arg4: memref<192x32xf32, #tpu.memory_space<vmem>>, %arg5: memref<16x192xf32, #tpu.memory_space<vmem>>, %arg6: memref<16x192xf32, #tpu.memory_space<vmem>>) attributes {dimension_semantics = [#tpu.dimension_semantics<parallel>, #tpu.dimension_semantics<parallel>, #tpu.dimension_semantics<arbitrary>], iteration_bounds = array<i64: 1, 1, 1>, scalar_prefetch = 0 : i64, scratch_operands = 1 : i64, tpu.core_type = #tpu.core_type<tc>, window_params = [{transform_indices = @transform_0, window_bounds = array<i64: 16, 32>}, {transform_indices = @transform_1, window_bounds = array<i64: 192, 32>}, {transform_indices = @transform_2, window_bounds = array<i64: 16, 192>}]} {
    %c0_i32 = arith.constant 0 : i32
    %0 = arith.cmpi eq, %arg2, %c0_i32 : i32
    %1 = arith.extui %0 : i1 to i32
    %c0_i32_0 = arith.constant 0 : i32
    %2 = arith.cmpi ne, %1, %c0_i32_0 : i32
    scf.if %2 {
      %cst_10 = arith.constant 0.000000e+00 : f32
      %12 = vector.broadcast %cst_10 : f32 to vector<16x192xf32>
      %c0_11 = arith.constant 0 : index
      %c0_12 = arith.constant 0 : index
      %13 = vector.load %arg6[%c0_11, %c0_12] : memref<16x192xf32, #tpu.memory_space<vmem>>, vector<16x192xf32>
      tpu.vector_store %arg6[%c0_11, %c0_12], %12 {strides = array<i32>} : memref<16x192xf32, #tpu.memory_space<vmem>>, vector<16x192xf32>,
    } else {
    }
    %c0 = arith.constant 0 : index
    %c0_1 = arith.constant 0 : index
    %3 = vector.load %arg6[%c0, %c0_1] : memref<16x192xf32, #tpu.memory_space<vmem>>, vector<16x192xf32>
    %c0_2 = arith.constant 0 : index
    %c0_3 = arith.constant 0 : index
    %4 = vector.load %arg3[%c0_2, %c0_3] : memref<16x32xf32, #tpu.memory_space<vmem>>, vector<16x32xf32>
    %c0_4 = arith.constant 0 : index
    %c0_5 = arith.constant 0 : index
    %5 = vector.load %arg4[%c0_4, %c0_5] : memref<192x32xf32, #tpu.memory_space<vmem>>, vector<192x32xf32>
    %cst = arith.constant dense<0.000000e+00> : vector<16x192xf32>
    %6 = tpu.matmul %4, %5, %cst {dimension_numbers = #tpu.dot_dimension_numbers<[1], [1], [0], [0], [0, 0, 1, 0], [], []>} : vector<16x32xf32>, vector<192x32xf32>, vector<16x192xf32> -> vector<16x192xf32>
    %7 = arith.addf %3, %6 : vector<16x192xf32>
    %c0_6 = arith.constant 0 : index
    %c0_7 = arith.constant 0 : index
    %8 = vector.load %arg6[%c0_6, %c0_7] : memref<16x192xf32, #tpu.memory_space<vmem>>, vector<16x192xf32>
    tpu.vector_store %arg6[%c0_6, %c0_7], %7 {strides = array<i32>} : memref<16x192xf32, #tpu.memory_space<vmem>>, vector<16x192xf32>,
    %c0_i32_8 = arith.constant 0 : i32
    %9 = arith.cmpi eq, %arg2, %c0_i32_8 : i32
    %10 = arith.extui %9 : i1 to i32
    %c0_i32_9 = arith.constant 0 : i32
    %11 = arith.cmpi ne, %10, %c0_i32_9 : i32
    scf.if %11 {
      %c0_10 = arith.constant 0 : index
      %c0_11 = arith.constant 0 : index
      %12 = vector.load %arg6[%c0_10, %c0_11] : memref<16x192xf32, #tpu.memory_space<vmem>>, vector<16x192xf32>
      %c0_12 = arith.constant 0 : index
      %c0_13 = arith.constant 0 : index
      %13 = vector.load %arg5[%c0_12, %c0_13] : memref<16x192xf32, #tpu.memory_space<vmem>>, vector<16x192xf32>
      tpu.vector_store %arg5[%c0_12, %c0_13], %12 {strides = array<i32>} : memref<16x192xf32, #tpu.memory_space<vmem>>, vector<16x192xf32>,
    } else {
    }
    return
  }
  func.func @transform_0(%arg0: i32, %arg1: i32, %arg2: i32) -> (i32, i32) {
    %c0_i32 = arith.constant 0 : i32
    return %arg0, %arg2 : i32, i32
  }
  func.func @transform_1(%arg0: i32, %arg1: i32, %arg2: i32) -> (i32, i32) {
    %c0_i32 = arith.constant 0 : i32
    return %arg1, %arg2 : i32, i32
  }
  func.func @transform_2(%arg0: i32, %arg1: i32, %arg2: i32) -> (i32, i32) {
    %c0_i32 = arith.constant 0 : i32
    return %arg0, %arg1 : i32, i32
  }
}

</mosaic_0001>

<llo_original>
// kernel: tpu_custom_call.1
$region0: #{tpu_custom_call.1}
  #allocation0 [shape = 'u32[]', space=smem, size = 0x4, offset = 0x4, fixed_abs, tag = 'smem constant byte address 0x4 - core index']
  #allocation1 [shape = 'u32[144,128]{1,0:T(1,128)}', space=vmem, size = 0x12000, scoped, tag = 'internal scratch']
  #allocation2 [shape = 'f32[16,192]{1,0:T(8,128)}', space=vmem, size = 0x4000, scoped, tag = 'scratch operand']
  %s0 = inlined_call_operand.vmem [shape: f32[16,32], index: 0, kind: input, shape index: {}]
  %s1 = inlined_call_operand.vmem [shape: f32[192,32], index: 1, kind: input, shape index: {}]
  %s2 = inlined_call_operand.hbm [shape: f32[16,192], index: 2, kind: output, shape index: {}]
  %s3 = sld [smem:[#allocation0]]
  $region26: #{tpu_custom_call.1} parent=0
    _
  %s5 = ssub.s32 1, %s3
  %s6 = scalar_select 0, %s5, %s3
  $region1: #{tpu_custom_call.1} parent=0
    #allocation3 [shape = 'u8[16384]{0}', space=vmem, size = 0x4000, scoped, tag = 'output window, operand 0, single buffered']
    #allocation4 [shape = 's32[1]{0}', space=sflag, size = 0x4, scoped, tag = 'scoped memory for tpu_custom_call.1']
    %7 = vsyncpa [#allocation4], 0
    // Predicated region
    $region2: #{tpu_custom_call.1} parent=1 // pred_check
      _
    $region3: #{tpu_custom_call.1} parent=1 // pred_check_branch
      %9 = sbr.rel (0) target = $region5
    $region4: #{tpu_custom_call.1} parent=1 // pred_region
      _
    $region5: #{tpu_custom_call.1} parent=1 // pred_fallthru
      _
    // Predicated region
    $region6: #{tpu_custom_call.1} parent=1 // pred_check
      _
    $region7: #{tpu_custom_call.1} parent=1 // pred_check_branch
      %11 = sbr.rel (0) target = $region9
    $region8: #{tpu_custom_call.1} parent=1 // pred_region
      _
    $region9: #{tpu_custom_call.1} parent=1 // pred_fallthru
      _
    %p12 = scmp.eq.s32.totalorder 0, 0
    // Predicated region
    $region10: #{tpu_custom_call.1} parent=1 // pred_check
      %p13 = pneg %p12
    $region11: #{tpu_custom_call.1} parent=1 // pred_check_branch
      %15 = sbr.rel (%p13) target = $region13
    $region12: #{tpu_custom_call.1} parent=1 // pred_region
      %16 = vst [vmem:[#allocation2] sm:$0xff] 0.0
      %vm17 = vcmask 523264
      %18 = vst.msk [vmem:[#allocation2 + $0x8] sm:$0xff] %vm17, 0.0
      %19 = vst [vmem:[#allocation2 + $0x10] sm:$0xff] 0.0
      %20 = vst.msk [vmem:[#allocation2 + $0x18] sm:$0xff] %vm17, 0.0
    $region13: #{tpu_custom_call.1} parent=1 // pred_fallthru
      _
    %v21 = vld [vmem:[#allocation2] sm:$0xff]
    %v22 = vld [vmem:[#allocation2 + $0x8] sm:$0xff]
    %v23 = vld [vmem:[#allocation2 + $0x10] sm:$0xff]
    %v24 = vld [vmem:[#allocation2 + $0x18] sm:$0xff]
    %v25 = vld [vmem:[%s0] sm:$0xff]
    %v26 = vld [vmem:[%s0 + $0x8] sm:$0xff]
    %v27 = vld [vmem:[%s1] sm:$0xff]
    %v28 = vld [vmem:[%s1 + $0x8] sm:$0xff]
    %v29 = vld [vmem:[%s1 + $0x10] sm:$0xff]
    %v30 = vld [vmem:[%s1 + $0x18] sm:$0xff]
    %v31 = vld [vmem:[%s1 + $0x20] sm:$0xff]
    %v32 = vld [vmem:[%s1 + $0x28] sm:$0xff]
    %v33 = vld [vmem:[%s1 + $0x30] sm:$0xff]
    %v34 = vld [vmem:[%s1 + $0x38] sm:$0xff]
    %v35 = vld [vmem:[%s1 + $0x40] sm:$0xff]
    %v36 = vld [vmem:[%s1 + $0x48] sm:$0xff]
    %v37 = vld [vmem:[%s1 + $0x50] sm:$0xff]
    %v38 = vld [vmem:[%s1 + $0x58] sm:$0xff]
    %v39 = vld [vmem:[%s1 + $0x60] sm:$0xff]
    %v40 = vld [vmem:[%s1 + $0x68] sm:$0xff]
    %v41 = vld [vmem:[%s1 + $0x70] sm:$0xff]
    %v42 = vld [vmem:[%s1 + $0x78] sm:$0xff]
    %v43 = vld [vmem:[%s1 + $0x80] sm:$0xff]
    %v44 = vld [vmem:[%s1 + $0x88] sm:$0xff]
    %v45 = vld [vmem:[%s1 + $0x90] sm:$0xff]
    %v46 = vld [vmem:[%s1 + $0x98] sm:$0xff]
    %v47 = vld [vmem:[%s1 + $0xa0] sm:$0xff]
    %v48 = vld [vmem:[%s1 + $0xa8] sm:$0xff]
    %v49 = vld [vmem:[%s1 + $0xb0] sm:$0xff]
    %v50 = vld [vmem:[%s1 + $0xb8] sm:$0xff]
    %vm51 = vcmask 261120
    %v53 = vsel %vm51, %v25, 0
    %v56 = vsel %vm51, %v26, 0
    %v59 = vsel %vm51, %v27, 0
    %v62 = vsel %vm51, %v28, 0
    %v65 = vsel %vm51, %v29, 0
    %v68 = vsel %vm51, %v30, 0
    %v71 = vsel %vm51, %v31, 0
    %v74 = vsel %vm51, %v32, 0
    %v77 = vsel %vm51, %v33, 0
    %v80 = vsel %vm51, %v34, 0
    %v83 = vsel %vm51, %v35, 0
    %v86 = vsel %vm51, %v36, 0
    %v89 = vsel %vm51, %v37, 0
    %v92 = vsel %vm51, %v38, 0
    %v95 = vsel %vm51, %v39, 0
    %v98 = vsel %vm51, %v40, 0
    %v101 = vsel %vm51, %v41, 0
    %v104 = vsel %vm51, %v42, 0
    %v107 = vsel %vm51, %v43, 0
    %v110 = vsel %vm51, %v44, 0
    %v113 = vsel %vm51, %v45, 0
    %v116 = vsel %vm51, %v46, 0
    %v119 = vsel %vm51, %v47, 0
    %v122 = vsel %vm51, %v48, 0
    %v125 = vsel %vm51, %v49, 0
    %v128 = vsel %vm51, %v50, 0
    %130 = vmatprep.subr.mxu0 0.0
    %131 = vmatpush1.xpose.msra.mxu0 %v104
    %132 = vmatprep.subr.mxu0 0.0
    %133 = vmatpush1.xpose.msra.mxu0 %v101
    %134 = vmatprep.subr.mxu0 0.0
    %135 = vmatpush1.xpose.msra.mxu0 %v98
    %136 = vmatprep.subr.mxu0 0.0
    %137 = vmatpush1.xpose.msra.mxu0 %v95
    %138 = vmatprep.subr.mxu0 0.0
    %139 = vmatpush1.xpose.msra.mxu0 %v92
    %140 = vmatprep.subr.mxu0 0.0
    %141 = vmatpush1.xpose.msra.mxu0 %v89
    %142 = vmatprep.subr.mxu0 0.0
    %143 = vmatpush1.xpose.msra.mxu0 %v86
    %144 = vmatprep.subr.mxu0 0.0
    %145 = vmatpush1.xpose.msra.mxu0 %v83
    %146 = vmatprep.subr.mxu0 0.0
    %147 = vmatpush1.xpose.msra.mxu0 %v80
    %148 = vmatprep.subr.mxu0 0.0
    %149 = vmatpush1.xpose.msra.mxu0 %v77
    %150 = vmatprep.subr.mxu0 0.0
    %151 = vmatpush1.xpose.msra.mxu0 %v74
    %152 = vmatprep.subr.mxu0 0.0
    %153 = vmatpush1.xpose.msra.mxu0 %v71
    %154 = vmatprep.subr.mxu0 0.0
    %155 = vmatpush1.xpose.msra.mxu0 %v68
    %156 = vmatprep.subr.mxu0 0.0
    %157 = vmatpush1.xpose.msra.mxu0 %v65
    %158 = vmatprep.subr.mxu0 0.0
    %159 = vmatpush1.xpose.msra.mxu0 %v62
    %160 = vmatprep.subr.mxu0 0.0
    %161 = vmatpush1.xpose.msra.mxu0 %v59
    %162 = vmatprep.subr.mxu0 0.0
    %163 = vmatpush2.xpose.msra.mxu0 0.0
    %164 = vmatprep.subr.mxu0 0.0
    %165 = vmatpush2.xpose.msra.mxu0 0.0
    %166 = vmatprep.subr.mxu0 0.0
    %167 = vmatpush2.xpose.msra.mxu0 0.0
    %168 = vmatprep.subr.mxu0 0.0
    %169 = vmatpush2.xpose.msra.mxu0 0.0
    %170 = vmatprep.subr.mxu0 0.0
    %171 = vmatpush2.xpose.msra.mxu0 0.0
    %172 = vmatprep.subr.mxu0 0.0
    %173 = vmatpush2.xpose.msra.mxu0 0.0
    %174 = vmatprep.subr.mxu0 0.0
    %175 = vmatpush2.xpose.msra.mxu0 0.0
    %176 = vmatprep.subr.mxu0 0.0
    %177 = vmatpush2.xpose.msra.mxu0 0.0
    %178 = vmatprep.subr.mxu0 0.0
    %179 = vmatpush2.xpose.msra.mxu0 %v128
    %180 = vmatprep.subr.mxu0 0.0
    %181 = vmatpush2.xpose.msra.mxu0 %v125
    %182 = vmatprep.subr.mxu0 0.0
    %183 = vmatpush2.xpose.msra.mxu0 %v122
    %184 = vmatprep.subr.mxu0 0.0
    %185 = vmatpush2.xpose.msra.mxu0 %v119
    %186 = vmatprep.subr.mxu0 0.0
    %187 = vmatpush2.xpose.msra.mxu0 %v116
    %188 = vmatprep.subr.mxu0 0.0
    %189 = vmatpush2.xpose.msra.mxu0 %v113
    %190 = vmatprep.subr.mxu0 0.0
    %191 = vmatpush2.xpose.msra.mxu0 %v110
    %192 = vmatprep.subr.mxu0 0.0
    %193 = vmatpush2.xpose.msra.mxu0 %v107
    %194 = vmatprep.mubr.f32.mxu0 0.0
    %195 = vmatmul.mubr.f32.gmra.mxu0 %v53
    %v196 = vpop.f32.mrf.mxu0
    %v197 = vadd.f32 0.0, %v196
    %v198 = vpop.f32.mrf.mxu0
    %v199 = vadd.f32 0.0, %v198
    %200 = vmatprep.mubr.f32.mxu0 0.0
    %201 = vmatmul.mubr.f32.gmra.mxu0 %v56
    %v202 = vpop.f32.mrf.mxu0
    %v203 = vadd.f32 0.0, %v202
    %v204 = vpop.f32.mrf.mxu0
    %v205 = vadd.f32 0.0, %v204
    %206 = vdwg.mxu0
    %v207 = vadd.f32 %v21, %v197
    %v208 = vadd.f32 %v22, %v199
    %v209 = vadd.f32 %v23, %v203
    %v210 = vadd.f32 %v24, %v205
    %211 = vst [vmem:[#allocation2] sm:$0xff] %v207
    %vm212 = vcmask 523264
    %213 = vst.msk [vmem:[#allocation2 + $0x8] sm:$0xff] %vm212, %v208
    %214 = vst [vmem:[#allocation2 + $0x10] sm:$0xff] %v209
    %215 = vst.msk [vmem:[#allocation2 + $0x18] sm:$0xff] %vm212, %v210
    // Predicated region
    $region14: #{tpu_custom_call.1} parent=1 // pred_check
      %p216 = pneg %p12
    $region15: #{tpu_custom_call.1} parent=1 // pred_check_branch
      %218 = sbr.rel (%p216) target = $region17
    $region16: #{tpu_custom_call.1} parent=1 // pred_region
      %v219 = vld [vmem:[#allocation2] sm:$0xff]
      %v220 = vld [vmem:[#allocation2 + $0x8] sm:$0xff]
      %v221 = vld [vmem:[#allocation2 + $0x10] sm:$0xff]
      %v222 = vld [vmem:[#allocation2 + $0x18] sm:$0xff]
      %223 = vst [vmem:[#allocation3] sm:$0xff] %v219
      %224 = vst.msk [vmem:[#allocation3 + $0x8] sm:$0xff] %vm212, %v220
      %225 = vst [vmem:[#allocation3 + $0x10] sm:$0xff] %v221
      %226 = vst.msk [vmem:[#allocation3 + $0x18] sm:$0xff] %vm212, %v222
    $region17: #{tpu_custom_call.1} parent=1 // pred_fallthru
      _
    // Predicated region
    $region18: #{tpu_custom_call.1} parent=1 // pred_check
      _
    $region19: #{tpu_custom_call.1} parent=1 // pred_check_branch
      %228 = sbr.rel (0) target = $region21
    $region20: #{tpu_custom_call.1} parent=1 // pred_region
      %s230 = ssub.s32 512, 512
      %231 = vsyncadd [#allocation4], %s230
      %s232 = sshll.u32 [#allocation3], 4
      %s233 = int_to_ptr.vmem [resolvable:$true] %s232
      %238 = dma.vmem_to_hbm [thread:$0]  %s233, 512, %s2, [#allocation4], 256, 256, 16
    $region21: #{tpu_custom_call.1} parent=1 // pred_fallthru
      _
    // Predicated region
    $region22: #{tpu_custom_call.1} parent=1 // pred_check
      _
    $region23: #{tpu_custom_call.1} parent=1 // pred_check_branch
      %240 = sbr.rel (0) target = $region25
    $region24: #{tpu_custom_call.1} parent=1 // pred_region
      %241 = dma.done [#allocation4], 512
    $region25: #{tpu_custom_call.1} parent=1 // pred_fallthru
      _
    %242 = vsyncpa [#allocation4], 1

</llo_original>
